<compile_context>
chip_gen: v6e
topology: v6e:2x2x1
jax: 0.10.0
libtpu: 0.0.40
codegen_flags: <defaults>
</compile_context>

<pallas_src>
import functools
import math

import numpy as np
import jax
import jax.numpy as jnp
from jax import lax
from jax.experimental import pallas as pl
from jax.experimental.pallas import tpu as pltpu

KSIZE = 5
HALO = KSIZE // 2            # 2
NUM_EXPERTS = 5              # conv5, conv3, conv1, avg3, avg5


def _round_up(v, m):
    return ((v + m - 1) // m) * m


# ----------------------------- Pallas kernel ------------------------------- #
def _mode_conv_kernel(x_ref, halo_ref, w_ref, o_ref, *, approx_recip):
    # x_ref   : (1, Ci, TL)        body of this L tile, channels-first
    # halo_ref: (1, 1, Ci, 4)      [left 2 | right 2] halo columns for this tile
    # w_ref   : (1, K, Co_t, Ci)   per-sample routed weights, tap-major
    # o_ref   : (1, Co_t, TL)      output tile, L on lanes (lane-dense store)
    body = x_ref[0]                                        # (Ci, TL)
    halo = halo_ref[0, 0]                                  # (Ci, 4)
    Ci, TL = body.shape
    lane = lax.broadcasted_iota(jnp.int32, (Ci, TL), 1)

    def tap(k):
        # Returns xk with xk[:, l] == x_global[:, tile_start + l + (k - 2)].
        d = k - HALO
        if d == 0:
            return body                                    # centre tap: zero cost
        xk = pltpu.roll(body, shift=(-d) % TL, axis=1)      # XLU, overlaps MXU
        if d < 0:                                          # left edge lanes [0, -d)
            for m in range(-d):
                col = halo[:, HALO + d + m:HALO + d + m + 1]   # (Ci, 1)
                xk = jnp.where(lane == m, col, xk)
        else:                                              # right edge lanes [TL-d, TL)
            for m in range(d):
                col = halo[:, HALO + m:HALO + m + 1]           # (Ci, 1)
                xk = jnp.where(lane == TL - d + m, col, xk)
        return xk

    # Five depth-Ci MXU matmuls on rolled operands, f32 accumulation.
    # TODO(synk): for mid-size Ci (~64..256) a fused (K*Ci)-deep im2col slab staged in
    # an 8-aligned VMEM scratch can fill the MXU better; per-tap is the right
    # structure for small Ci (MXU idle either way) and large Ci (already full depth).
    acc = jnp.dot(w_ref[0, 0], tap(0), preferred_element_type=jnp.float32)
    for k in range(1, KSIZE):
        acc = acc + jnp.dot(w_ref[0, k], tap(k), preferred_element_type=jnp.float32)

    # Mish, rational form: mish(a) = a * e*(e+2) / (e*(e+2) + 2), e = exp(a);
    # for a > 20 (PyTorch softplus threshold) mish(a) == a in f32.
    e = jnp.exp(jnp.minimum(acc, 20.0))
    num = e * (e + 2.0)
    tsp = num * pl.reciprocal(num + 2.0, approx=approx_recip)
    y = jnp.where(acc > 20.0, acc, acc * tsp)
    o_ref[0] = y.astype(o_ref.dtype)


# --------------------------- parameters / routing --------------------------- #
def init_params(key, num_tasks, n_in, n_out):
    ks = jax.random.split(key, 7)

    def kaiming_uniform(k, co, ci, ksz):
        # kaiming_uniform_(a=sqrt(5), mode='fan_out') -> bound = 1/sqrt(fan_out)
        fan_out = co * ksz * ksz
        bound = 1.0 / math.sqrt(fan_out)
        return jax.random.uniform(k, (co, ci, ksz, ksz), jnp.float32, -bound, bound)

    p = {
        "conv5": kaiming_uniform(ks[0], n_out, n_in, 5),
        "conv3": kaiming_uniform(ks[1], n_out, n_in, 3),
        "conv1": kaiming_uniform(ks[2], n_out, n_in, 1),
        "avg3_conv": kaiming_uniform(ks[3], n_out, n_in, 1),
        "avg5_conv": kaiming_uniform(ks[4], n_out, n_in, 1),
    }
    gb = 1.0 / math.sqrt(num_tasks)
    p["gate_w"] = jax.random.uniform(ks[5], (NUM_EXPERTS * n_out, num_tasks),
                                     jnp.float32, -gb, gb)
    p["gate_b"] = jax.random.uniform(ks[6], (NUM_EXPERTS * n_out,),
                                     jnp.float32, -gb, gb)
    return p


def _pad_to(kern, target):
    hp = (target - kern.shape[2]) // 2
    wp = (target - kern.shape[3]) // 2
    return jnp.pad(kern, ((0, 0), (0, 0), (hp, hp), (wp, wp)))


def _expert_bank(p):
    avg3 = jnp.full((3, 3), 1.0 / 9.0, jnp.float32)
    avg5 = jnp.full((5, 5), 1.0 / 25.0, jnp.float32)
    e5 = p["conv5"]
    e3 = _pad_to(p["conv3"], KSIZE)
    e1 = _pad_to(p["conv1"], KSIZE)
    a3 = _pad_to(p["avg3_conv"] * avg3[None, None], KSIZE)
    a5 = p["avg5_conv"] * avg5[None, None]
    return jnp.stack([e5, e3, e1, a3, a5], axis=0)          # (E, Co, Ci, 5, 5)


def _gate(t, p, N, Co):
    g = (t @ p["gate_w"].T + p["gate_b"]).reshape(N, NUM_EXPERTS, Co)
    return jax.nn.softmax(g, axis=1)


def _routed_weights(g, p):
    # Only the centre column (w == 2) of each 5x5 kernel matters because the input W
    # dimension is 1 with 'same' padding.  Routing reduce stays in f32.
    bank = _expert_bank(p)[..., KSIZE // 2]                  # (E, Co, Ci, K)
    return jnp.einsum("neo,eoik->nkoi", g, bank)             # (N, K, Co, Ci)  tap-major


# ------------------------------ tiling helpers ------------------------------ #
def _choose_l_tiling(L, Ci, Co, x_itemsize, out_itemsize, l_tile_target=None):
    if l_tile_target is None:
        # Target ~2 MiB of x-block + out-block per grid step (amortizes per-step
        # overhead, well under any generation's scoped-VMEM default with 2x buffers).
        target_bytes = 2 << 20
        per_col = max(Ci * x_itemsize + Co * out_itemsize, 1)
        tl = max(512, _round_up(target_bytes // per_col, 128))
    else:
        tl = max(int(l_tile_target), 1)
    if L <= tl:
        return L, L, 1                        # block == full L dim (any size allowed)
    nl = pl.cdiv(L, tl)
    tl = _round_up(pl.cdiv(L, nl), 128)       # minimize tail padding, keep 128-aligned
    nl = pl.cdiv(L, tl)
    return tl, nl * tl, nl


def _choose_co_tiling(Co):
    # Bound the routed-weight / output blocks for very large Co (v7x: 64 MiB VMEM);
    # 256 matches the 256-wide MXU on v6e/v7x (and still divides cleanly on v5e).
    if Co > 256 and Co % 256 == 0:
        return 256, Co // 256
    return Co, 1


def _derive_vmem_limit(block_bytes):
    # Blocks are double-buffered by the pipeline; add headroom for f32 accumulator /
    # temporaries.  Cap at 48 MiB so v7x (64 MiB physical per TC) keeps headroom.
    limit = 4 * block_bytes + (8 << 20)
    return int(min(max(limit, 16 << 20), 48 << 20))


def _build_halos(x, nl, tl):
    # halo[n, j] = [x[n,:,j*tl-2 : j*tl] | x[n,:,(j+1)*tl : (j+1)*tl+2]] (zeros at edges)
    N, Ci, _ = x.shape
    if nl == 1:
        return jnp.zeros((N, 1, Ci, 2 * HALO), x.dtype)
    xr = x.reshape(N, Ci, nl, tl)
    tails = xr[:, :, :, tl - HALO:]                          # (N, Ci, nl, 2)
    heads = xr[:, :, :, :HALO]                               # (N, Ci, nl, 2)
    zero = jnp.zeros((N, Ci, 1, HALO), x.dtype)
    left = jnp.concatenate([zero, tails[:, :, :-1, :]], axis=2)
    right = jnp.concatenate([heads[:, :, 1:, :], zero], axis=2)
    halo = jnp.concatenate([left, right], axis=3)            # (N, Ci, nl, 4)
    return jnp.transpose(halo, (0, 2, 1, 3))                 # (N, nl, Ci, 4)


# --------------------------------- wrapper ---------------------------------- #
def mode_subnet_conv1d(x, t, p, *, use_bf16_matmul=True, out_dtype=jnp.float32,
                       l_tile_target=None):
    """x: (N, C_in, L), t: (N, num_tasks) -> (N, C_out, L).
    Matches MoDESubNetConv1d forward (training-mode per-sample routing + Mish)."""
    N, Ci, L = x.shape
    Co = p["conv5"].shape[0]
    K = KSIZE

    g = _gate(t, p, N, Co)                                   # (N, E, Co)  f32
    mm_dtype = jnp.bfloat16 if use_bf16_matmul else x.dtype
    wr = _routed_weights(g, p).astype(mm_dtype)              # (N, K, Co, Ci)

    # Cast x BEFORE any data movement so the dominant HBM read is halved in bf16 mode.
    xs = x.astype(mm_dtype)
    out_itemsize = np.dtype(out_dtype).itemsize

    tl, lt, nl = _choose_l_tiling(L, Ci, Co, xs.dtype.itemsize, out_itemsize,
                                  l_tile_target)
    xp = xs if lt == L else jnp.pad(xs, ((0, 0), (0, 0), (0, lt - L)))
    halos = _build_halos(xp, nl, tl)                         # (N, nl, Ci, 4)

    co_t, nco = _choose_co_tiling(Co)

    block_bytes = (Ci * tl * xp.dtype.itemsize
                   + Ci * 2 * HALO * xp.dtype.itemsize
                   + K * co_t * Ci * wr.dtype.itemsize
                   + co_t * tl * out_itemsize)
    vmem_limit = _derive_vmem_limit(block_bytes)

    flops = 2 * N * lt * K * Ci * Co + 8 * N * lt * Co
    bytes_accessed = (xp.size * xp.dtype.itemsize
                      + halos.size * halos.dtype.itemsize
                      + wr.size * wr.dtype.itemsize
                      + N * Co * lt * out_itemsize)
    cost = pl.CostEstimate(flops=int(flops), transcendentals=int(2 * N * lt * Co),
                           bytes_accessed=int(bytes_accessed))

    kern = functools.partial(_mode_conv_kernel, approx_recip=bool(use_bf16_matmul))

    # Grid: (sample, Co tile, L tile).  Weight block index is constant over the inner
    # L axis -> no re-DMA of the routed weights while sweeping L.
    y = pl.pallas_call(
        kern,
        out_shape=jax.ShapeDtypeStruct((N, Co, lt), out_dtype),
        grid=(N, nco, nl),
        in_specs=[
            pl.BlockSpec((1, Ci, tl), lambda n, c, j: (n, 0, j)),
            pl.BlockSpec((1, 1, Ci, 2 * HALO), lambda n, c, j: (n, j, 0, 0)),
            pl.BlockSpec((1, K, co_t, Ci), lambda n, c, j: (n, 0, c, 0)),
        ],
        out_specs=pl.BlockSpec((1, co_t, tl), lambda n, c, j: (n, c, j)),
        compiler_params=pltpu.CompilerParams(
            dimension_semantics=("parallel", "parallel", "parallel"),
            vmem_limit_bytes=vmem_limit),
        cost_estimate=cost,
    )(xp, halos, wr)

    return y if lt == L else y[:, :, :L]


# --------------------------- pure-JAX reference ------------------------------ #
def ref_forward(x, t, p):
    N, Ci, L = x.shape
    Co = p["conv5"].shape[0]
    g = _gate(t, p, N, Co)
    experts = _expert_bank(p)
    W = jnp.einsum("neo,eoihw->noihw", g, experts)           # per-sample routed 5x5
    x4 = x[:, :, :, None]                                    # NCHW with W == 1
    ys = []
    for n in range(N):                                       # training-branch semantics
        yn = lax.conv_general_dilated(x4[n:n + 1], W[n], (1, 1), "SAME",
                                      dimension_numbers=("NCHW", "OIHW", "NCHW"))
        ys.append(yn)
    y = jnp.concatenate(ys, axis=0)[:, :, :, 0]
    sp = jnp.where(y > 20.0, y, jnp.log1p(jnp.exp(jnp.minimum(y, 20.0))))
    return y * jnp.tanh(sp)


if __name__ == "__main__":
    key = jax.random.PRNGKey(0)
    kp, kx1, kt, kx2, kx3 = jax.random.split(key, 5)

    num_tasks, n_in, n_out = 3, 4, 8
    params = init_params(kp, num_tasks, n_in, n_out)
    N = 2
    t = jax.random.normal(kt, (N, num_tasks), jnp.float32)

    # 1) small single-tile shape, f32 MXU path, exact reciprocal -> tight tolerance.
    x1 = jax.random.normal(kx1, (N, n_in, 16), jnp.float32)
    y1 = mode_subnet_conv1d(x1, t, params, use_bf16_matmul=False)
    jax.block_until_ready(y1)
    np.testing.assert_allclose(np.asarray(y1), np.asarray(ref_forward(x1, t, params)),
                               rtol=1e-4, atol=1e-4)

    # 2) ragged L with a forced small tile: exercises the multi-tile roll+halo-patch
    #    path and the zero-padded last tile; still f32 -> tight tolerance.
    x2 = jax.random.normal(kx2, (N, n_in, 700), jnp.float32)
    y2 = mode_subnet_conv1d(x2, t, params, use_bf16_matmul=False, l_tile_target=256)
    jax.block_until_ready(y2)
    np.testing.assert_allclose(np.asarray(y2), np.asarray(ref_forward(x2, t, params)),
                               rtol=1e-4, atol=1e-4)

    # 3) bf16 matmul operands (cast in wrapper) + bf16 output + approx-reciprocal
    #    Mish, adaptive single tile -> loosened tolerance for bf16 rounding.
    x3 = jax.random.normal(kx3, (N, n_in, 1024), jnp.float32)
    y3 = mode_subnet_conv1d(x3, t, params, use_bf16_matmul=True,
                            out_dtype=jnp.bfloat16)
    jax.block_until_ready(y3)
    np.testing.assert_allclose(np.asarray(y3.astype(jnp.float32)),
                               np.asarray(ref_forward(x3, t, params)),
                               rtol=3e-2, atol=3e-2)

    print("KERNEL_OK")
</pallas_src>

<mosaic_0001>
module attributes {stable_mosaic.version = 11 : i64} {
  func.func @_mode_conv_kernel(%arg0: i32, %arg1: i32, %arg2: i32, %arg3: memref<1x4x16xf32, #tpu.memory_space<vmem>>, %arg4: memref<1x1x4x4xf32, #tpu.memory_space<vmem>>, %arg5: memref<1x5x8x4xf32, #tpu.memory_space<vmem>>, %arg6: memref<1x8x16xf32, #tpu.memory_space<vmem>>) attributes {dimension_semantics = [#tpu.dimension_semantics<parallel>, #tpu.dimension_semantics<parallel>, #tpu.dimension_semantics<parallel>], iteration_bounds = array<i64: 2, 1, 1>, scalar_prefetch = 0 : i64, scratch_operands = 0 : i64, tpu.core_type = #tpu.core_type<tc>, window_params = [{transform_indices = @transform_0, window_bounds = array<i64: 1, 4, 16>}, {transform_indices = @transform_1, window_bounds = array<i64: 1, 1, 4, 4>}, {transform_indices = @transform_2, window_bounds = array<i64: 1, 5, 8, 4>}, {transform_indices = @transform_3, window_bounds = array<i64: 1, 8, 16>}]} {
    %c0 = arith.constant 0 : index
    %c0_0 = arith.constant 0 : index
    %c0_1 = arith.constant 0 : index
    %0 = vector.load %arg3[%c0, %c0_0, %c0_1] : memref<1x4x16xf32, #tpu.memory_space<vmem>>, vector<1x4x16xf32>
    %1 = vector.shape_cast %0 : vector<1x4x16xf32> to vector<4x16xf32>
    %c0_2 = arith.constant 0 : index
    %c0_3 = arith.constant 0 : index
    %c0_4 = arith.constant 0 : index
    %c0_5 = arith.constant 0 : index
    %2 = vector.load %arg4[%c0_2, %c0_3, %c0_4, %c0_5] : memref<1x1x4x4xf32, #tpu.memory_space<vmem>>, vector<1x1x4x4xf32>
    %3 = vector.shape_cast %2 : vector<1x1x4x4xf32> to vector<4x4xf32>
    %4 = tpu.iota {dimensions = array<i32: 1>} : vector<4x16xi32>
    %c0_6 = arith.constant 0 : index
    %c0_7 = arith.constant 0 : index
    %c0_8 = arith.constant 0 : index
    %c0_9 = arith.constant 0 : index
    %5 = vector.load %arg5[%c0_6, %c0_7, %c0_8, %c0_9] : memref<1x5x8x4xf32, #tpu.memory_space<vmem>>, vector<1x1x8x4xf32>
    %6 = vector.shape_cast %5 : vector<1x1x8x4xf32> to vector<8x4xf32>
    %c2_i32 = arith.constant 2 : i32
    %7 = tpu.dynamic_rotate %1 by %c2_i32 dim 1 : vector<4x16xf32>, i32 -> vector<4x16xf32>
    %8 = vector.extract_strided_slice %3 {offsets = [0, 0], sizes = [4, 1], strides = [1, 1]} : vector<4x4xf32> to vector<4x1xf32>
    %c0_i32 = arith.constant 0 : i32
    %9 = vector.broadcast %c0_i32 : i32 to vector<4x16xi32>
    %10 = arith.cmpi eq, %4, %9 : vector<4x16xi32>
    %11 = vector.shape_cast %8 : vector<4x1xf32> to vector<4x1xf32>
    %12 = vector.broadcast %11 : vector<4x1xf32> to vector<4x16xf32>
    %13 = arith.select %10, %12, %7 : vector<4x16xi1>, vector<4x16xf32>
    %14 = vector.extract_strided_slice %3 {offsets = [0, 1], sizes = [4, 1], strides = [1, 1]} : vector<4x4xf32> to vector<4x1xf32>
    %c1_i32 = arith.constant 1 : i32
    %15 = vector.broadcast %c1_i32 : i32 to vector<4x16xi32>
    %16 = arith.cmpi eq, %4, %15 : vector<4x16xi32>
    %17 = vector.shape_cast %14 : vector<4x1xf32> to vector<4x1xf32>
    %18 = vector.broadcast %17 : vector<4x1xf32> to vector<4x16xf32>
    %19 = arith.select %16, %18, %13 : vector<4x16xi1>, vector<4x16xf32>
    %cst = arith.constant dense<0.000000e+00> : vector<8x16xf32>
    %20 = tpu.matmul %6, %19, %cst {dimension_numbers = #tpu.dot_dimension_numbers<[1], [0], [0], [1], [0, 0, 1, 1], [], []>} : vector<8x4xf32>, vector<4x16xf32>, vector<8x16xf32> -> vector<8x16xf32>
    %c0_10 = arith.constant 0 : index
    %c1 = arith.constant 1 : index
    %c0_11 = arith.constant 0 : index
    %c0_12 = arith.constant 0 : index
    %21 = vector.load %arg5[%c0_10, %c1, %c0_11, %c0_12] : memref<1x5x8x4xf32, #tpu.memory_space<vmem>>, vector<1x1x8x4xf32>
    %22 = vector.shape_cast %21 : vector<1x1x8x4xf32> to vector<8x4xf32>
    %c1_i32_13 = arith.constant 1 : i32
    %23 = tpu.dynamic_rotate %1 by %c1_i32_13 dim 1 : vector<4x16xf32>, i32 -> vector<4x16xf32>
    %24 = vector.extract_strided_slice %3 {offsets = [0, 1], sizes = [4, 1], strides = [1, 1]} : vector<4x4xf32> to vector<4x1xf32>
    %c0_i32_14 = arith.constant 0 : i32
    %25 = vector.broadcast %c0_i32_14 : i32 to vector<4x16xi32>
    %26 = arith.cmpi eq, %4, %25 : vector<4x16xi32>
    %27 = vector.shape_cast %24 : vector<4x1xf32> to vector<4x1xf32>
    %28 = vector.broadcast %27 : vector<4x1xf32> to vector<4x16xf32>
    %29 = arith.select %26, %28, %23 : vector<4x16xi1>, vector<4x16xf32>
    %cst_15 = arith.constant dense<0.000000e+00> : vector<8x16xf32>
    %30 = tpu.matmul %22, %29, %cst_15 {dimension_numbers = #tpu.dot_dimension_numbers<[1], [0], [0], [1], [0, 0, 1, 1], [], []>} : vector<8x4xf32>, vector<4x16xf32>, vector<8x16xf32> -> vector<8x16xf32>
    %31 = arith.addf %20, %30 : vector<8x16xf32>
    %c0_16 = arith.constant 0 : index
    %c2 = arith.constant 2 : index
    %c0_17 = arith.constant 0 : index
    %c0_18 = arith.constant 0 : index
    %32 = vector.load %arg5[%c0_16, %c2, %c0_17, %c0_18] : memref<1x5x8x4xf32, #tpu.memory_space<vmem>>, vector<1x1x8x4xf32>
    %33 = vector.shape_cast %32 : vector<1x1x8x4xf32> to vector<8x4xf32>
    %cst_19 = arith.constant dense<0.000000e+00> : vector<8x16xf32>
    %34 = tpu.matmul %33, %1, %cst_19 {dimension_numbers = #tpu.dot_dimension_numbers<[1], [0], [0], [1], [0, 0, 1, 1], [], []>} : vector<8x4xf32>, vector<4x16xf32>, vector<8x16xf32> -> vector<8x16xf32>
    %35 = arith.addf %31, %34 : vector<8x16xf32>
    %c0_20 = arith.constant 0 : index
    %c3 = arith.constant 3 : index
    %c0_21 = arith.constant 0 : index
    %c0_22 = arith.constant 0 : index
    %36 = vector.load %arg5[%c0_20, %c3, %c0_21, %c0_22] : memref<1x5x8x4xf32, #tpu.memory_space<vmem>>, vector<1x1x8x4xf32>
    %37 = vector.shape_cast %36 : vector<1x1x8x4xf32> to vector<8x4xf32>
    %c15_i32 = arith.constant 15 : i32
    %38 = tpu.dynamic_rotate %1 by %c15_i32 dim 1 : vector<4x16xf32>, i32 -> vector<4x16xf32>
    %39 = vector.extract_strided_slice %3 {offsets = [0, 2], sizes = [4, 1], strides = [1, 1]} : vector<4x4xf32> to vector<4x1xf32>
    %c15_i32_23 = arith.constant 15 : i32
    %40 = vector.broadcast %c15_i32_23 : i32 to vector<4x16xi32>
    %41 = arith.cmpi eq, %4, %40 : vector<4x16xi32>
    %42 = vector.shape_cast %39 : vector<4x1xf32> to vector<4x1xf32>
    %43 = vector.broadcast %42 : vector<4x1xf32> to vector<4x16xf32>
    %44 = arith.select %41, %43, %38 : vector<4x16xi1>, vector<4x16xf32>
    %cst_24 = arith.constant dense<0.000000e+00> : vector<8x16xf32>
    %45 = tpu.matmul %37, %44, %cst_24 {dimension_numbers = #tpu.dot_dimension_numbers<[1], [0], [0], [1], [0, 0, 1, 1], [], []>} : vector<8x4xf32>, vector<4x16xf32>, vector<8x16xf32> -> vector<8x16xf32>
    %46 = arith.addf %35, %45 : vector<8x16xf32>
    %c0_25 = arith.constant 0 : index
    %c4 = arith.constant 4 : index
    %c0_26 = arith.constant 0 : index
    %c0_27 = arith.constant 0 : index
    %47 = vector.load %arg5[%c0_25, %c4, %c0_26, %c0_27] : memref<1x5x8x4xf32, #tpu.memory_space<vmem>>, vector<1x1x8x4xf32>
    %48 = vector.shape_cast %47 : vector<1x1x8x4xf32> to vector<8x4xf32>
    %c14_i32 = arith.constant 14 : i32
    %49 = tpu.dynamic_rotate %1 by %c14_i32 dim 1 : vector<4x16xf32>, i32 -> vector<4x16xf32>
    %50 = vector.extract_strided_slice %3 {offsets = [0, 2], sizes = [4, 1], strides = [1, 1]} : vector<4x4xf32> to vector<4x1xf32>
    %c14_i32_28 = arith.constant 14 : i32
    %51 = vector.broadcast %c14_i32_28 : i32 to vector<4x16xi32>
    %52 = arith.cmpi eq, %4, %51 : vector<4x16xi32>
    %53 = vector.shape_cast %50 : vector<4x1xf32> to vector<4x1xf32>
    %54 = vector.broadcast %53 : vector<4x1xf32> to vector<4x16xf32>
    %55 = arith.select %52, %54, %49 : vector<4x16xi1>, vector<4x16xf32>
    %56 = vector.extract_strided_slice %3 {offsets = [0, 3], sizes = [4, 1], strides = [1, 1]} : vector<4x4xf32> to vector<4x1xf32>
    %c15_i32_29 = arith.constant 15 : i32
    %57 = vector.broadcast %c15_i32_29 : i32 to vector<4x16xi32>
    %58 = arith.cmpi eq, %4, %57 : vector<4x16xi32>
    %59 = vector.shape_cast %56 : vector<4x1xf32> to vector<4x1xf32>
    %60 = vector.broadcast %59 : vector<4x1xf32> to vector<4x16xf32>
    %61 = arith.select %58, %60, %55 : vector<4x16xi1>, vector<4x16xf32>
    %cst_30 = arith.constant dense<0.000000e+00> : vector<8x16xf32>
    %62 = tpu.matmul %48, %61, %cst_30 {dimension_numbers = #tpu.dot_dimension_numbers<[1], [0], [0], [1], [0, 0, 1, 1], [], []>} : vector<8x4xf32>, vector<4x16xf32>, vector<8x16xf32> -> vector<8x16xf32>
    %63 = arith.addf %46, %62 : vector<8x16xf32>
    %cst_31 = arith.constant 2.000000e+01 : f32
    %64 = vector.broadcast %cst_31 : f32 to vector<8x16xf32>
    %65 = arith.minimumf %63, %64 : vector<8x16xf32>
    %66 = math.exp %65 : vector<8x16xf32>
    %cst_32 = arith.constant 2.000000e+00 : f32
    %67 = vector.broadcast %cst_32 : f32 to vector<8x16xf32>
    %68 = arith.addf %66, %67 : vector<8x16xf32>
    %69 = arith.mulf %66, %68 : vector<8x16xf32>
    %cst_33 = arith.constant 2.000000e+00 : f32
    %70 = vector.broadcast %cst_33 : f32 to vector<8x16xf32>
    %71 = arith.addf %69, %70 : vector<8x16xf32>
    %72 = tpu.reciprocal %71 : vector<8x16xf32> -> vector<8x16xf32>
    %73 = arith.mulf %69, %72 : vector<8x16xf32>
    %cst_34 = arith.constant 2.000000e+01 : f32
    %74 = vector.broadcast %cst_34 : f32 to vector<8x16xf32>
    %75 = arith.cmpf ogt, %63, %74 : vector<8x16xf32>
    %76 = arith.mulf %63, %73 : vector<8x16xf32>
    %77 = arith.select %75, %63, %76 : vector<8x16xi1>, vector<8x16xf32>
    %c0_35 = arith.constant 0 : index
    %c0_36 = arith.constant 0 : index
    %c0_37 = arith.constant 0 : index
    %78 = vector.load %arg6[%c0_35, %c0_36, %c0_37] : memref<1x8x16xf32, #tpu.memory_space<vmem>>, vector<1x8x16xf32>
    %79 = vector.shape_cast %78 : vector<1x8x16xf32> to vector<8x16xf32>
    %80 = vector.shape_cast %77 : vector<8x16xf32> to vector<1x8x16xf32>
    tpu.vector_store %arg6[%c0_35, %c0_36, %c0_37], %80 {strides = array<i32>} : memref<1x8x16xf32, #tpu.memory_space<vmem>>, vector<1x8x16xf32>,
    return
  }
  func.func @transform_0(%arg0: i32, %arg1: i32, %arg2: i32) -> (i32, i32, i32) {
    %c0_i32 = arith.constant 0 : i32
    %c0_i32_0 = arith.constant 0 : i32
    return %arg0, %c0_i32, %arg2 : i32, i32, i32
  }
  func.func @transform_1(%arg0: i32, %arg1: i32, %arg2: i32) -> (i32, i32, i32, i32) {
    %c0_i32 = arith.constant 0 : i32
    %c0_i32_0 = arith.constant 0 : i32
    %c0_i32_1 = arith.constant 0 : i32
    return %arg0, %arg2, %c0_i32, %c0_i32_0 : i32, i32, i32, i32
  }
  func.func @transform_2(%arg0: i32, %arg1: i32, %arg2: i32) -> (i32, i32, i32, i32) {
    %c0_i32 = arith.constant 0 : i32
    %c0_i32_0 = arith.constant 0 : i32
    %c0_i32_1 = arith.constant 0 : i32
    return %arg0, %c0_i32, %arg1, %c0_i32_0 : i32, i32, i32, i32
  }
  func.func @transform_3(%arg0: i32, %arg1: i32, %arg2: i32) -> (i32, i32, i32) {
    %c0_i32 = arith.constant 0 : i32
    return %arg0, %arg1, %arg2 : i32, i32, i32
  }
}

</mosaic_0001>

<llo_original>
// kernel: tpu_custom_call.1
$region0: #{tpu_custom_call.1}
  #allocation0 [shape = 'u32[]', space=smem, size = 0x4, offset = 0x4, fixed_abs, tag = 'smem constant byte address 0x4 - core index']
  #allocation1 [shape = 'u32[144,128]{1,0:T(1,128)}', space=vmem, size = 0x12000, scoped, tag = 'internal scratch']
  %s0 = inlined_call_operand.vmem [shape: f32[2,4,16], index: 0, kind: input, shape index: {}]
  %s1 = inlined_call_operand.vmem [shape: f32[2,1,4,4], index: 1, kind: input, shape index: {}]
  %s2 = inlined_call_operand.vmem [shape: f32[2,5,8,4], index: 2, kind: input, shape index: {}]
  %s3 = inlined_call_operand.hbm [shape: f32[2,8,16], index: 3, kind: output, shape index: {}]
  %s4 = sld [smem:[#allocation0]]
  $region45: #{tpu_custom_call.1} parent=0
    _
  %s6 = ssub.s32 1, %s4
  %s7 = scalar_select 0, %s6, %s4
  $region1: #{tpu_custom_call.1} parent=0
    #allocation2 [shape = 'u8[8192]{0}', space=vmem, size = 0x2000, scoped, tag = 'output window, operand 0']
    #allocation3 [shape = 's32[2]{0}', space=sflag, size = 0x8, scoped, tag = 'scoped memory for tpu_custom_call.1']
    %8 = vsyncpa [#allocation3], 0
    %s9 = scalar_lea.sflag [#allocation3], 1
    %10 = vsyncpa %s9, 0
    loop: start=0, step=1, limit=4
    $region2: #{tpu_custom_call.1} parent=1 // loop_pre_header
      _
    $region3: #{tpu_custom_call.1} parent=1 // loop_header
      %s12 = sphi 0, %s16
      %p13 = scmp.ge.s32.totalorder %s12, 4
      %s19 = sphi 0, %s38
      %s20 = sphi 0, %s34
      %s21 = sphi 0, %s30
      %s22 = sphi 0, %s19
      %s23 = sphi 0, %s20
      %s24 = sphi 0, %s21
      %s25 = sphi 0, %s22
      %s26 = sphi 0, %s23
      %s27 = sphi 0, %s24
      %s43 = sphi 0, %s45
      %s46 = sphi 0, %s43
      %s47 = sphi 0, %s46
      %s63 = sphi 0, %s47
      %s71 = sphi 0, %s73
      %s74 = sphi 0, %s71
      %s75 = sphi 0, %s74
      %s91 = sphi 0, %s75
      %s99 = sphi 0, %s101
      %s102 = sphi 0, %s99
      %s103 = sphi 0, %s102
      %s119 = sphi 0, %s103
      %s129 = sphi 0, %s131
      %s132 = sphi 0, %s129
      %s133 = sphi 0, %s132
      %s149 = sphi 0, %s133
    $region4: #{tpu_custom_call.1} parent=1 // loop_header_branch
      %15 = sbr.rel (%p13) target = $region8
    $region5: #{tpu_custom_call.1} parent=1 // loop_body
      %s17 = ssub.s32 %s12, 1
      %s18 = ssub.s32 %s12, 2
      %s28 = sadd.s32 1, %s21
      %p29 = scmp.ge.s32.totalorder %s28, 1
      %s30 = scalar_select %p29, 0, %s28
      %s31 = sadd.s32 1, %s20
      %s32 = scalar_select %p29, %s31, %s20
      %p33 = scmp.ge.s32.totalorder %s32, 1
      %s34 = scalar_select %p33, 0, %s32
      %s35 = sadd.s32 1, %s19
      %s36 = scalar_select %p33, %s35, %s19
      %p37 = scmp.ge.s32.totalorder %s36, 2
      %s38 = scalar_select %p37, 0, %s36
      %s39 = ssub.s32 %s19, %s38
      %s40 = ssub.s32 %s21, %s30
      %s41 = sor.u32 %s39, %s40
      %p42 = scmp.eq.s32.totalorder %s41, 0
      %s44 = sadd.s32 %s43, 1
      %s45 = scalar_select %p42, %s43, %s44
      %p48 = pneg %p42
      %p49 = scmp.eq.s32.totalorder %s12, 1
      %p50 = por %p48, %p49
      %p51 = scmp.ne.s32.totalorder %s43, %s46
      %p52 = scmp.eq.s32.totalorder %s12, 0
      %p53 = por %p51, %p52
      %p54 = scmp.ne.s32.totalorder %s43, %s46
      %p55 = scmp.eq.s32.totalorder %s17, 1
      %p56 = por %p54, %p55
      %p57 = scmp.ne.s32.totalorder %s46, %s47
      %p58 = scmp.eq.s32.totalorder %s17, 0
      %p59 = por %p57, %p58
      %p60 = scmp.ne.s32.totalorder %s46, %s47
      %p61 = scmp.eq.s32.totalorder %s18, 1
      %p62 = por %p60, %p61
      %p64 = scmp.ne.s32.totalorder %s47, %s63
      %p65 = scmp.eq.s32.totalorder %s18, 0
      %p66 = por %p64, %p65
      %s67 = ssub.s32 %s19, %s38
      %s68 = ssub.s32 %s21, %s30
      %s69 = sor.u32 %s67, %s68
      %p70 = scmp.eq.s32.totalorder %s69, 0
      %s72 = sadd.s32 %s71, 1
      %s73 = scalar_select %p70, %s71, %s72
      %p76 = pneg %p70
      %p77 = scmp.eq.s32.totalorder %s12, 1
      %p78 = por %p76, %p77
      %p79 = scmp.ne.s32.totalorder %s71, %s74
      %p80 = scmp.eq.s32.totalorder %s12, 0
      %p81 = por %p79, %p80
      %p82 = scmp.ne.s32.totalorder %s71, %s74
      %p83 = scmp.eq.s32.totalorder %s17, 1
      %p84 = por %p82, %p83
      %p85 = scmp.ne.s32.totalorder %s74, %s75
      %p86 = scmp.eq.s32.totalorder %s17, 0
      %p87 = por %p85, %p86
      %p88 = scmp.ne.s32.totalorder %s74, %s75
      %p89 = scmp.eq.s32.totalorder %s18, 1
      %p90 = por %p88, %p89
      %p92 = scmp.ne.s32.totalorder %s75, %s91
      %p93 = scmp.eq.s32.totalorder %s18, 0
      %p94 = por %p92, %p93
      %s95 = ssub.s32 %s19, %s38
      %s96 = ssub.s32 %s20, %s34
      %s97 = sor.u32 %s95, %s96
      %p98 = scmp.eq.s32.totalorder %s97, 0
      %s100 = sadd.s32 %s99, 1
      %s101 = scalar_select %p98, %s99, %s100
      %p104 = pneg %p98
      %p105 = scmp.eq.s32.totalorder %s12, 1
      %p106 = por %p104, %p105
      %p107 = scmp.ne.s32.totalorder %s99, %s102
      %p108 = scmp.eq.s32.totalorder %s12, 0
      %p109 = por %p107, %p108
      %p110 = scmp.ne.s32.totalorder %s99, %s102
      %p111 = scmp.eq.s32.totalorder %s17, 1
      %p112 = por %p110, %p111
      %p113 = scmp.ne.s32.totalorder %s102, %s103
      %p114 = scmp.eq.s32.totalorder %s17, 0
      %p115 = por %p113, %p114
      %p116 = scmp.ne.s32.totalorder %s102, %s103
      %p117 = scmp.eq.s32.totalorder %s18, 1
      %p118 = por %p116, %p117
      %p120 = scmp.ne.s32.totalorder %s103, %s119
      %p121 = scmp.eq.s32.totalorder %s18, 0
      %p122 = por %p120, %p121
      %s123 = ssub.s32 %s19, %s38
      %s124 = ssub.s32 %s20, %s34
      %s125 = sor.u32 %s123, %s124
      %s126 = ssub.s32 %s21, %s30
      %s127 = sor.u32 %s125, %s126
      %p128 = scmp.eq.s32.totalorder %s127, 0
      %s130 = sadd.s32 %s129, 1
      %s131 = scalar_select %p128, %s129, %s130
      %p134 = pneg %p128
      %p135 = scmp.eq.s32.totalorder %s12, 1
      %p136 = por %p134, %p135
      %p137 = scmp.ne.s32.totalorder %s129, %s132
      %p138 = scmp.eq.s32.totalorder %s12, 0
      %p139 = por %p137, %p138
      %p140 = scmp.ne.s32.totalorder %s129, %s132
      %p141 = scmp.eq.s32.totalorder %s17, 1
      %p142 = por %p140, %p141
      %p143 = scmp.ne.s32.totalorder %s132, %s133
      %p144 = scmp.eq.s32.totalorder %s17, 0
      %p145 = por %p143, %p144
      %p146 = scmp.ne.s32.totalorder %s132, %s133
      %p147 = scmp.eq.s32.totalorder %s18, 1
      %p148 = por %p146, %p147
      %p150 = scmp.ne.s32.totalorder %s133, %s149
      %p151 = scmp.eq.s32.totalorder %s18, 0
      %p152 = por %p150, %p151
      %p153 = scmp.le.s32.totalorder 1, %s12
      %p154 = scmp.lt.s32.totalorder %s12, 3
      %p155 = pnand %p153, %p154
      %p156 = pneg %p155
      // Predicated region
      $region9: #{tpu_custom_call.1} parent=5 // pred_check
        _
      $region10: #{tpu_custom_call.1} parent=5 // pred_check_branch
        %158 = sbr.rel (%p155) target = $region12
      $region11: #{tpu_custom_call.1} parent=5 // pred_region
        %s159 = ssub.s32 %s12, 1
      $region12: #{tpu_custom_call.1} parent=5 // pred_fallthru
        _
      %p160 = scmp.lt.s32.totalorder %s12, 2
      // Predicated region
      $region13: #{tpu_custom_call.1} parent=5 // pred_check
        %p161 = pneg %p160
      $region14: #{tpu_custom_call.1} parent=5 // pred_check_branch
        %163 = sbr.rel (%p161) target = $region16
      $region15: #{tpu_custom_call.1} parent=5 // pred_region
        // Predicated region
        $region17: #{tpu_custom_call.1} parent=15 // pred_check
          %p164 = pneg %p53
        $region18: #{tpu_custom_call.1} parent=15 // pred_check_branch
          %166 = sbr.rel (%p164) target = $region20
        $region19: #{tpu_custom_call.1} parent=15 // pred_region
          %p167 = scmp.lt.s32.totalorder %s19, 1
          %s168 = scalar_select %p167, %s19, 1
          %p169 = scmp.lt.s32.totalorder %s21, 0
          %s170 = scalar_select %p169, %s21, 0
          %s171 = sadd.s32 %s170, %s168
          %s172 = smul.addr %s171, 4
          %s173 = scalar_lea.vmem %s0, %s172
        $region20: #{tpu_custom_call.1} parent=15 // pred_fallthru
          _
        // Predicated region
        $region21: #{tpu_custom_call.1} parent=15 // pred_check
          %p174 = pneg %p81
        $region22: #{tpu_custom_call.1} parent=15 // pred_check_branch
          %176 = sbr.rel (%p174) target = $region24
        $region23: #{tpu_custom_call.1} parent=15 // pred_region
          %p177 = scmp.lt.s32.totalorder %s19, 1
          %s178 = scalar_select %p177, %s19, 1
          %p179 = scmp.lt.s32.totalorder %s21, 0
          %s180 = scalar_select %p179, %s21, 0
          %s181 = sadd.s32 %s180, %s178
          %s182 = smul.addr %s181, 4
          %s183 = scalar_lea.vmem %s1, %s182
        $region24: #{tpu_custom_call.1} parent=15 // pred_fallthru
          _
        // Predicated region
        $region25: #{tpu_custom_call.1} parent=15 // pred_check
          %p184 = pneg %p109
        $region26: #{tpu_custom_call.1} parent=15 // pred_check_branch
          %186 = sbr.rel (%p184) target = $region28
        $region27: #{tpu_custom_call.1} parent=15 // pred_region
          %p187 = scmp.lt.s32.totalorder %s19, 1
          %s188 = scalar_select %p187, %s19, 1
          %p189 = scmp.lt.s32.totalorder %s20, 0
          %s190 = scalar_select %p189, %s20, 0
          %s191 = smul.addr %s188, 5
          %s192 = sadd.s32 %s190, %s191
          %s193 = smul.addr %s192, 8
          %s194 = scalar_lea.vmem %s2, %s193
        $region28: #{tpu_custom_call.1} parent=15 // pred_fallthru
          _
      $region16: #{tpu_custom_call.1} parent=5 // pred_fallthru
        _
      %p195 = scmp.le.s32.totalorder 1, %s12
      %p196 = scmp.lt.s32.totalorder %s12, 3
      %p197 = pnand %p195, %p196
      %p198 = pneg %p197
      // Predicated region
      $region29: #{tpu_custom_call.1} parent=5 // pred_check
        _
      $region30: #{tpu_custom_call.1} parent=5 // pred_check_branch
        %200 = sbr.rel (%p197) target = $region32
      $region31: #{tpu_custom_call.1} parent=5 // pred_region
        %s201 = ssub.s32 %s12, 1
        %p202 = scmp.lt.s32.totalorder %s22, 1
        %s203 = scalar_select %p202, %s22, 1
        %p204 = scmp.lt.s32.totalorder %s24, 0
        %s205 = scalar_select %p204, %s24, 0
        %s206 = sadd.s32 %s205, %s203
        %s207 = smul.addr %s206, 4
        %s208 = scalar_lea.vmem %s0, %s207
        %p209 = pneg %p59
        %p210 = pneg %p56
        %p211 = scmp.lt.s32.totalorder %s22, 1
        %s212 = scalar_select %p211, %s22, 1
        %p213 = scmp.lt.s32.totalorder %s24, 0
        %s214 = scalar_select %p213, %s24, 0
        %s215 = sadd.s32 %s214, %s212
        %s216 = smul.addr %s215, 4
        %s217 = scalar_lea.vmem %s1, %s216
        %p218 = pneg %p87
        %p219 = pneg %p84
        %p220 = scmp.lt.s32.totalorder %s22, 1
        %s221 = scalar_select %p220, %s22, 1
        %p222 = scmp.lt.s32.totalorder %s23, 0
        %s223 = scalar_select %p222, %s23, 0
        %s224 = smul.addr %s221, 5
        %s225 = sadd.s32 %s223, %s224
        %s226 = smul.addr %s225, 8
        %s227 = scalar_lea.vmem %s2, %s226
        %p228 = pneg %p115
        %p229 = pneg %p112
        %p230 = pneg %p145
        %p231 = pneg %p142
        %s232 = sand.u32 %s132, 1
        %s233 = scalar_lea.sflag [#allocation3], %s232
        %s234 = sand.u32 %s132, 1
        %s235 = smul.addr %s234, 8
        %s236 = scalar_lea.vmem [#allocation2], %s235
        %p237 = scmp.lt.s32.totalorder %s22, 1
        %s238 = scalar_select %p237, %s22, 1
        %p239 = scmp.lt.s32.totalorder %s24, 0
        %s240 = scalar_select %p239, %s24, 0
        %s241 = sadd.s32 %s240, %s238
        %s242 = smul.addr %s241, 4
        %s243 = scalar_lea.vmem %s0, %s242
        %p244 = scmp.lt.s32.totalorder %s22, 1
        %s245 = scalar_select %p244, %s22, 1
        %p246 = scmp.lt.s32.totalorder %s24, 0
        %s247 = scalar_select %p246, %s24, 0
        %s248 = sadd.s32 %s247, %s245
        %s249 = smul.addr %s248, 4
        %s250 = scalar_lea.vmem %s1, %s249
        %p251 = scmp.lt.s32.totalorder %s22, 1
        %s252 = scalar_select %p251, %s22, 1
        %p253 = scmp.lt.s32.totalorder %s23, 0
        %s254 = scalar_select %p253, %s23, 0
        %s255 = smul.addr %s252, 5
        %s256 = sadd.s32 %s254, %s255
        %s257 = smul.addr %s256, 8
        %s258 = scalar_lea.vmem %s2, %s257
        %v259 = vld [vmem:[%s243] sm:$0xf]
        %v260 = vld [vmem:[%s250] sm:$0xf]
        %v261 = vlaneseq
        %v262 = vand.u32 %v261, 127
        %v263 = vld [vmem:[%s258] sm:$0xff]
        %vm264 = vcmask 1047680
        %265 = vrot.lane.b32.xlu0 %v259, 16
        %v266 = vpop.permute.xlu0 %265
        %v267 = vsel %vm264, %v266, %v259
        %268 = vrot.lane.b32.xlu0 %v267, 16
        %v269 = vpop.permute.xlu0 %268
        %v270 = vsel %vm264, %v269, %v259
        %vm271 = vcmp.eq.s32.totalorder %v262, 0
        %273 = vset.pattern.permute.xlu0 0
        %274 = vperm.xlu0 %273, %v260
        %v275 = vpop.permute.xlu0 %274
        %278 = vrot.lane.b32.xlu0 %v270, 114
        %v279 = vpop.permute.xlu0 %278
        %v281 = vsel %vm271, %v275, %v279
        %vm282 = vcmp.eq.s32.totalorder %v262, 1
        %283 = vset.pattern.permute.xlu0 1
        %284 = vperm.xlu0 %283, %v260
        %v285 = vpop.permute.xlu0 %284
        %v287 = vsel %vm282, %v285, %v281
        %s288 = scalar_lea.vmem %s258, 8
        %v289 = vld [vmem:[%s288] sm:$0xff]
        %290 = vrot.lane.b32.xlu0 %v270, 113
        %v291 = vpop.permute.xlu0 %290
        %v293 = vsel %vm271, %v285, %v291
        %vm294 = vcmask 31744
        %v296 = vsel %vm294, %v289, 0
        %vm298 = vcmask 1043456
        %v300 = vsel %vm298, %v293, 0
        %302 = vmatprep.subr.mxu0 0.0
        %303 = vmatpush1.msra.mxu0 0.0
        %304 = vmatprep.subr.mxu0 0.0
        %305 = vmatpush1.msra.mxu0 0.0
        %306 = vmatprep.subr.mxu0 0.0
        %307 = vmatpush1.msra.mxu0 0.0
        %308 = vmatprep.subr.mxu0 0.0
        %309 = vmatpush1.msra.mxu0 0.0
        %310 = vmatprep.subr.mxu0 0.0
        %311 = vmatpush1.msra.mxu0 0.0
        %312 = vmatprep.subr.mxu0 0.0
        %313 = vmatpush1.msra.mxu0 0.0
        %314 = vmatprep.subr.mxu0 0.0
        %315 = vmatpush1.msra.mxu0 0.0
        %316 = vmatprep.subr.mxu0 0.0
        %317 = vmatpush1.msra.mxu0 0.0
        %318 = vmatprep.subr.mxu0 0.0
        %319 = vmatpush1.msra.mxu0 0.0
        %320 = vmatprep.subr.mxu0 0.0
        %321 = vmatpush1.msra.mxu0 0.0
        %322 = vmatprep.subr.mxu0 0.0
        %323 = vmatpush1.msra.mxu0 0.0
        %324 = vmatprep.subr.mxu0 0.0
        %325 = vmatpush1.msra.mxu0 0.0
        %326 = vmatprep.subr.mxu0 0.0
        %327 = vmatpush1.msra.mxu0 0.0
        %328 = vmatprep.subr.mxu0 0.0
        %329 = vmatpush1.msra.mxu0 0.0
        %330 = vmatprep.subr.mxu0 0.0
        %331 = vmatpush1.msra.mxu0 0.0
        %332 = vmatprep.subr.mxu0 0.0
        %333 = vmatpush1.msra.mxu0 %v300
        %334 = vmatprep.subr.mxu0 0.0
        %335 = vmatpush2.msra.mxu0 0.0
        %336 = vmatprep.subr.mxu0 0.0
        %337 = vmatpush2.msra.mxu0 0.0
        %338 = vmatprep.subr.mxu0 0.0
        %339 = vmatpush2.msra.mxu0 0.0
        %340 = vmatprep.subr.mxu0 0.0
        %341 = vmatpush2.msra.mxu0 0.0
        %342 = vmatprep.subr.mxu0 0.0
        %343 = vmatpush2.msra.mxu0 0.0
        %344 = vmatprep.subr.mxu0 0.0
        %345 = vmatpush2.msra.mxu0 0.0
        %346 = vmatprep.subr.mxu0 0.0
        %347 = vmatpush2.msra.mxu0 0.0
        %348 = vmatprep.subr.mxu0 0.0
        %349 = vmatpush2.msra.mxu0 0.0
        %350 = vmatprep.subr.mxu0 0.0
        %351 = vmatpush2.msra.mxu0 0.0
        %352 = vmatprep.subr.mxu0 0.0
        %353 = vmatpush2.msra.mxu0 0.0
        %354 = vmatprep.subr.mxu0 0.0
        %355 = vmatpush2.msra.mxu0 0.0
        %356 = vmatprep.subr.mxu0 0.0
        %357 = vmatpush2.msra.mxu0 0.0
        %358 = vmatprep.subr.mxu0 0.0
        %359 = vmatpush2.msra.mxu0 0.0
        %360 = vmatprep.subr.mxu0 0.0
        %361 = vmatpush2.msra.mxu0 0.0
        %362 = vmatprep.subr.mxu0 0.0
        %363 = vmatpush2.msra.mxu0 0.0
        %364 = vmatprep.subr.mxu0 0.0
        %365 = vmatpush2.msra.mxu0 0.0
        %366 = vmatprep.mubr.f32.mxu0 0.0
        %367 = vmatmul.mubr.f32.gmra.mxu0 %v296
        %v368 = vpop.f32.mrf.mxu0
        %v369 = vadd.f32 0.0, %v368
        %v370 = vpop.f32.mrf.mxu0
        %371 = vdwg.mxu0
        %v373 = vsel %vm294, %v263, 0
        %v376 = vsel %vm298, %v287, 0
        %378 = vmatprep.subr.mxu0 0.0
        %379 = vmatpush1.msra.mxu0 0.0
        %380 = vmatprep.subr.mxu0 0.0
        %381 = vmatpush1.msra.mxu0 0.0
        %382 = vmatprep.subr.mxu0 0.0
        %383 = vmatpush1.msra.mxu0 0.0
        %384 = vmatprep.subr.mxu0 0.0
        %385 = vmatpush1.msra.mxu0 0.0
        %386 = vmatprep.subr.mxu0 0.0
        %387 = vmatpush1.msra.mxu0 0.0
        %388 = vmatprep.subr.mxu0 0.0
        %389 = vmatpush1.msra.mxu0 0.0
        %390 = vmatprep.subr.mxu0 0.0
        %391 = vmatpush1.msra.mxu0 0.0
        %392 = vmatprep.subr.mxu0 0.0
        %393 = vmatpush1.msra.mxu0 0.0
        %394 = vmatprep.subr.mxu0 0.0
        %395 = vmatpush1.msra.mxu0 0.0
        %396 = vmatprep.subr.mxu0 0.0
        %397 = vmatpush1.msra.mxu0 0.0
        %398 = vmatprep.subr.mxu0 0.0
        %399 = vmatpush1.msra.mxu0 0.0
        %400 = vmatprep.subr.mxu0 0.0
        %401 = vmatpush1.msra.mxu0 0.0
        %402 = vmatprep.subr.mxu0 0.0
        %403 = vmatpush1.msra.mxu0 0.0
        %404 = vmatprep.subr.mxu0 0.0
        %405 = vmatpush1.msra.mxu0 0.0
        %406 = vmatprep.subr.mxu0 0.0
        %407 = vmatpush1.msra.mxu0 0.0
        %408 = vmatprep.subr.mxu0 0.0
        %409 = vmatpush1.msra.mxu0 %v376
        %410 = vmatprep.subr.mxu0 0.0
        %411 = vmatpush2.msra.mxu0 0.0
        %412 = vmatprep.subr.mxu0 0.0
        %413 = vmatpush2.msra.mxu0 0.0
        %414 = vmatprep.subr.mxu0 0.0
        %415 = vmatpush2.msra.mxu0 0.0
        %416 = vmatprep.subr.mxu0 0.0
        %417 = vmatpush2.msra.mxu0 0.0
        %418 = vmatprep.subr.mxu0 0.0
        %419 = vmatpush2.msra.mxu0 0.0
        %420 = vmatprep.subr.mxu0 0.0
        %421 = vmatpush2.msra.mxu0 0.0
        %422 = vmatprep.subr.mxu0 0.0
        %423 = vmatpush2.msra.mxu0 0.0
        %424 = vmatprep.subr.mxu0 0.0
        %425 = vmatpush2.msra.mxu0 0.0
        %426 = vmatprep.subr.mxu0 0.0
        %427 = vmatpush2.msra.mxu0 0.0
        %428 = vmatprep.subr.mxu0 0.0
        %429 = vmatpush2.msra.mxu0 0.0
        %430 = vmatprep.subr.mxu0 0.0
        %431 = vmatpush2.msra.mxu0 0.0
        %432 = vmatprep.subr.mxu0 0.0
        %433 = vmatpush2.msra.mxu0 0.0
        %434 = vmatprep.subr.mxu0 0.0
        %435 = vmatpush2.msra.mxu0 0.0
        %436 = vmatprep.subr.mxu0 0.0
        %437 = vmatpush2.msra.mxu0 0.0
        %438 = vmatprep.subr.mxu0 0.0
        %439 = vmatpush2.msra.mxu0 0.0
        %440 = vmatprep.subr.mxu0 0.0
        %441 = vmatpush2.msra.mxu0 0.0
        %442 = vmatprep.mubr.f32.mxu0 0.0
        %443 = vmatmul.mubr.f32.gmra.mxu0 %v373
        %v444 = vpop.f32.mrf.mxu0
        %v445 = vadd.f32 %v369, %v444
        %v446 = vpop.f32.mrf.mxu0
        %447 = vdwg.mxu0
        %s448 = scalar_lea.vmem %s258, 16
        %v449 = vld [vmem:[%s448] sm:$0xff]
        %v451 = vsel %vm294, %v449, 0
        %v454 = vsel %vm298, %v259, 0
        %456 = vmatprep.subr.mxu0 0.0
        %457 = vmatpush1.msra.mxu0 0.0
        %458 = vmatprep.subr.mxu0 0.0
        %459 = vmatpush1.msra.mxu0 0.0
        %460 = vmatprep.subr.mxu0 0.0
        %461 = vmatpush1.msra.mxu0 0.0
        %462 = vmatprep.subr.mxu0 0.0
        %463 = vmatpush1.msra.mxu0 0.0
        %464 = vmatprep.subr.mxu0 0.0
        %465 = vmatpush1.msra.mxu0 0.0
        %466 = vmatprep.subr.mxu0 0.0
        %467 = vmatpush1.msra.mxu0 0.0
        %468 = vmatprep.subr.mxu0 0.0
        %469 = vmatpush1.msra.mxu0 0.0
        %470 = vmatprep.subr.mxu0 0.0
        %471 = vmatpush1.msra.mxu0 0.0
        %472 = vmatprep.subr.mxu0 0.0
        %473 = vmatpush1.msra.mxu0 0.0
        %474 = vmatprep.subr.mxu0 0.0
        %475 = vmatpush1.msra.mxu0 0.0
        %476 = vmatprep.subr.mxu0 0.0
        %477 = vmatpush1.msra.mxu0 0.0
        %478 = vmatprep.subr.mxu0 0.0
        %479 = vmatpush1.msra.mxu0 0.0
        %480 = vmatprep.subr.mxu0 0.0
        %481 = vmatpush1.msra.mxu0 0.0
        %482 = vmatprep.subr.mxu0 0.0
        %483 = vmatpush1.msra.mxu0 0.0
        %484 = vmatprep.subr.mxu0 0.0
        %485 = vmatpush1.msra.mxu0 0.0
        %486 = vmatprep.subr.mxu0 0.0
        %487 = vmatpush1.msra.mxu0 %v454
        %488 = vmatprep.subr.mxu0 0.0
        %489 = vmatpush2.msra.mxu0 0.0
        %490 = vmatprep.subr.mxu0 0.0
        %491 = vmatpush2.msra.mxu0 0.0
        %492 = vmatprep.subr.mxu0 0.0
        %493 = vmatpush2.msra.mxu0 0.0
        %494 = vmatprep.subr.mxu0 0.0
        %495 = vmatpush2.msra.mxu0 0.0
        %496 = vmatprep.subr.mxu0 0.0
        %497 = vmatpush2.msra.mxu0 0.0
        %498 = vmatprep.subr.mxu0 0.0
        %499 = vmatpush2.msra.mxu0 0.0
        %500 = vmatprep.subr.mxu0 0.0
        %501 = vmatpush2.msra.mxu0 0.0
        %502 = vmatprep.subr.mxu0 0.0
        %503 = vmatpush2.msra.mxu0 0.0
        %504 = vmatprep.subr.mxu0 0.0
        %505 = vmatpush2.msra.mxu0 0.0
        %506 = vmatprep.subr.mxu0 0.0
        %507 = vmatpush2.msra.mxu0 0.0
        %508 = vmatprep.subr.mxu0 0.0
        %509 = vmatpush2.msra.mxu0 0.0
        %510 = vmatprep.subr.mxu0 0.0
        %511 = vmatpush2.msra.mxu0 0.0
        %512 = vmatprep.subr.mxu0 0.0
        %513 = vmatpush2.msra.mxu0 0.0
        %514 = vmatprep.subr.mxu0 0.0
        %515 = vmatpush2.msra.mxu0 0.0
        %516 = vmatprep.subr.mxu0 0.0
        %517 = vmatpush2.msra.mxu0 0.0
        %518 = vmatprep.subr.mxu0 0.0
        %519 = vmatpush2.msra.mxu0 0.0
        %520 = vmatprep.mubr.f32.mxu0 0.0
        %521 = vmatmul.mubr.f32.gmra.mxu0 %v451
        %v522 = vpop.f32.mrf.mxu0
        %v523 = vadd.f32 0.0, %v522
        %v524 = vpop.f32.mrf.mxu0
        %525 = vdwg.mxu0
        %v526 = vadd.f32 %v445, %v523
        %s527 = scalar_lea.vmem %s258, 24
        %v528 = vld [vmem:[%s527] sm:$0xff]
        %vm529 = vcmp.eq.s32.totalorder %v262, 15
        %530 = vset.pattern.permute.xlu0 2
        %531 = vperm.xlu0 %530, %v260
        %v532 = vpop.permute.xlu0 %531
        %534 = vrot.lane.b32.xlu0 %v270, 127
        %v535 = vpop.permute.xlu0 %534
        %v537 = vsel %vm529, %v532, %v535
        %v539 = vsel %vm294, %v528, 0
        %v542 = vsel %vm298, %v537, 0
        %544 = vmatprep.subr.mxu0 0.0
        %545 = vmatpush1.msra.mxu0 0.0
        %546 = vmatprep.subr.mxu0 0.0
        %547 = vmatpush1.msra.mxu0 0.0
        %548 = vmatprep.subr.mxu0 0.0
        %549 = vmatpush1.msra.mxu0 0.0
        %550 = vmatprep.subr.mxu0 0.0
        %551 = vmatpush1.msra.mxu0 0.0
        %552 = vmatprep.subr.mxu0 0.0
        %553 = vmatpush1.msra.mxu0 0.0
        %554 = vmatprep.subr.mxu0 0.0
        %555 = vmatpush1.msra.mxu0 0.0
        %556 = vmatprep.subr.mxu0 0.0
        %557 = vmatpush1.msra.mxu0 0.0
        %558 = vmatprep.subr.mxu0 0.0
        %559 = vmatpush1.msra.mxu0 0.0
        %560 = vmatprep.subr.mxu0 0.0
        %561 = vmatpush1.msra.mxu0 0.0
        %562 = vmatprep.subr.mxu0 0.0
        %563 = vmatpush1.msra.mxu0 0.0
        %564 = vmatprep.subr.mxu0 0.0
        %565 = vmatpush1.msra.mxu0 0.0
        %566 = vmatprep.subr.mxu0 0.0
        %567 = vmatpush1.msra.mxu0 0.0
        %568 = vmatprep.subr.mxu0 0.0
        %569 = vmatpush1.msra.mxu0 0.0
        %570 = vmatprep.subr.mxu0 0.0
        %571 = vmatpush1.msra.mxu0 0.0
        %572 = vmatprep.subr.mxu0 0.0
        %573 = vmatpush1.msra.mxu0 0.0
        %574 = vmatprep.subr.mxu0 0.0
        %575 = vmatpush1.msra.mxu0 %v542
        %576 = vmatprep.subr.mxu0 0.0
        %577 = vmatpush2.msra.mxu0 0.0
        %578 = vmatprep.subr.mxu0 0.0
        %579 = vmatpush2.msra.mxu0 0.0
        %580 = vmatprep.subr.mxu0 0.0
        %581 = vmatpush2.msra.mxu0 0.0
        %582 = vmatprep.subr.mxu0 0.0
        %583 = vmatpush2.msra.mxu0 0.0
        %584 = vmatprep.subr.mxu0 0.0
        %585 = vmatpush2.msra.mxu0 0.0
        %586 = vmatprep.subr.mxu0 0.0
        %587 = vmatpush2.msra.mxu0 0.0
        %588 = vmatprep.subr.mxu0 0.0
        %589 = vmatpush2.msra.mxu0 0.0
        %590 = vmatprep.subr.mxu0 0.0
        %591 = vmatpush2.msra.mxu0 0.0
        %592 = vmatprep.subr.mxu0 0.0
        %593 = vmatpush2.msra.mxu0 0.0
        %594 = vmatprep.subr.mxu0 0.0
        %595 = vmatpush2.msra.mxu0 0.0
        %596 = vmatprep.subr.mxu0 0.0
        %597 = vmatpush2.msra.mxu0 0.0
        %598 = vmatprep.subr.mxu0 0.0
        %599 = vmatpush2.msra.mxu0 0.0
        %600 = vmatprep.subr.mxu0 0.0
        %601 = vmatpush2.msra.mxu0 0.0
        %602 = vmatprep.subr.mxu0 0.0
        %603 = vmatpush2.msra.mxu0 0.0
        %604 = vmatprep.subr.mxu0 0.0
        %605 = vmatpush2.msra.mxu0 0.0
        %606 = vmatprep.subr.mxu0 0.0
        %607 = vmatpush2.msra.mxu0 0.0
        %608 = vmatprep.mubr.f32.mxu0 0.0
        %609 = vmatmul.mubr.f32.gmra.mxu0 %v539
        %v610 = vpop.f32.mrf.mxu0
        %v611 = vadd.f32 0.0, %v610
        %v612 = vpop.f32.mrf.mxu0
        %613 = vdwg.mxu0
        %v614 = vadd.f32 %v526, %v611
        %s615 = scalar_lea.vmem %s258, 32
        %v616 = vld [vmem:[%s615] sm:$0xff]
        %vm617 = vcmp.eq.s32.totalorder %v262, 14
        %618 = vrot.lane.b32.xlu0 %v270, 126
        %v619 = vpop.permute.xlu0 %618
        %v621 = vsel %vm617, %v532, %v619
        %622 = vset.pattern.permute.xlu0 3
        %623 = vperm.xlu0 %622, %v260
        %v624 = vpop.permute.xlu0 %623
        %v626 = vsel %vm529, %v624, %v621
        %v628 = vsel %vm294, %v616, 0
        %v631 = vsel %vm298, %v626, 0
        %633 = vmatprep.subr.mxu0 0.0
        %634 = vmatpush1.msra.mxu0 0.0
        %635 = vmatprep.subr.mxu0 0.0
        %636 = vmatpush1.msra.mxu0 0.0
        %637 = vmatprep.subr.mxu0 0.0
        %638 = vmatpush1.msra.mxu0 0.0
        %639 = vmatprep.subr.mxu0 0.0
        %640 = vmatpush1.msra.mxu0 0.0
        %641 = vmatprep.subr.mxu0 0.0
        %642 = vmatpush1.msra.mxu0 0.0
        %643 = vmatprep.subr.mxu0 0.0
        %644 = vmatpush1.msra.mxu0 0.0
        %645 = vmatprep.subr.mxu0 0.0
        %646 = vmatpush1.msra.mxu0 0.0
        %647 = vmatprep.subr.mxu0 0.0
        %648 = vmatpush1.msra.mxu0 0.0
        %649 = vmatprep.subr.mxu0 0.0
        %650 = vmatpush1.msra.mxu0 0.0
        %651 = vmatprep.subr.mxu0 0.0
        %652 = vmatpush1.msra.mxu0 0.0
        %653 = vmatprep.subr.mxu0 0.0
        %654 = vmatpush1.msra.mxu0 0.0
        %655 = vmatprep.subr.mxu0 0.0
        %656 = vmatpush1.msra.mxu0 0.0
        %657 = vmatprep.subr.mxu0 0.0
        %658 = vmatpush1.msra.mxu0 0.0
        %659 = vmatprep.subr.mxu0 0.0
        %660 = vmatpush1.msra.mxu0 0.0
        %661 = vmatprep.subr.mxu0 0.0
        %662 = vmatpush1.msra.mxu0 0.0
        %663 = vmatprep.subr.mxu0 0.0
        %664 = vmatpush1.msra.mxu0 %v631
        %665 = vmatprep.subr.mxu0 0.0
        %666 = vmatpush2.msra.mxu0 0.0
        %667 = vmatprep.subr.mxu0 0.0
        %668 = vmatpush2.msra.mxu0 0.0
        %669 = vmatprep.subr.mxu0 0.0
        %670 = vmatpush2.msra.mxu0 0.0
        %671 = vmatprep.subr.mxu0 0.0
        %672 = vmatpush2.msra.mxu0 0.0
        %673 = vmatprep.subr.mxu0 0.0
        %674 = vmatpush2.msra.mxu0 0.0
        %675 = vmatprep.subr.mxu0 0.0
        %676 = vmatpush2.msra.mxu0 0.0
        %677 = vmatprep.subr.mxu0 0.0
        %678 = vmatpush2.msra.mxu0 0.0
        %679 = vmatprep.subr.mxu0 0.0
        %680 = vmatpush2.msra.mxu0 0.0
        %681 = vmatprep.subr.mxu0 0.0
        %682 = vmatpush2.msra.mxu0 0.0
        %683 = vmatprep.subr.mxu0 0.0
        %684 = vmatpush2.msra.mxu0 0.0
        %685 = vmatprep.subr.mxu0 0.0
        %686 = vmatpush2.msra.mxu0 0.0
        %687 = vmatprep.subr.mxu0 0.0
        %688 = vmatpush2.msra.mxu0 0.0
        %689 = vmatprep.subr.mxu0 0.0
        %690 = vmatpush2.msra.mxu0 0.0
        %691 = vmatprep.subr.mxu0 0.0
        %692 = vmatpush2.msra.mxu0 0.0
        %693 = vmatprep.subr.mxu0 0.0
        %694 = vmatpush2.msra.mxu0 0.0
        %695 = vmatprep.subr.mxu0 0.0
        %696 = vmatpush2.msra.mxu0 0.0
        %697 = vmatprep.mubr.f32.mxu0 0.0
        %698 = vmatmul.mubr.f32.gmra.mxu0 %v628
        %v699 = vpop.f32.mrf.mxu0
        %v700 = vadd.f32 0.0, %v699
        %v701 = vpop.f32.mrf.mxu0
        %702 = vdwg.mxu0
        %v703 = vadd.f32 %v614, %v700
        %v704 = vmin.f32 %v703, 20.0
        %v705 = vmul.f32 %v704, 1.442695
        %v706 = vpow.pop %v705
        %v707 = vadd.f32 %v706, 2.0
        %v708 = vmul.f32 %v706, %v707
        %v709 = vadd.f32 %v708, 2.0
        %v710 = vrcp.pop %v709
        %v711 = vmul.f32 %v708, %v710
        %vm712 = vcmp.gt.f32.partialorder %v703, 20.0
        %v713 = vmul.f32 %v703, %v711
        %v714 = vsel %vm712, %v703, %v713
        %vm715 = vcmask 130048
        %716 = vst.msk [vmem:[%s236] sm:$0xff] %vm715, %v714
        %s717 = sand.u32 %s132, 1
        %s718 = scalar_lea.sflag [#allocation3], %s717
        %s719 = sand.u32 %s132, 1
        %s720 = smul.addr %s719, 8
        %s721 = scalar_lea.vmem [#allocation2], %s720
        // Predicated region
        $region33: #{tpu_custom_call.1} parent=31 // pred_check
          %p722 = pneg %p142
        $region34: #{tpu_custom_call.1} parent=31 // pred_check_branch
          %724 = sbr.rel (%p722) target = $region36
        $region35: #{tpu_custom_call.1} parent=31 // pred_region
          %s726 = ssub.s32 128, 128
          %727 = vsyncadd %s718, %s726
          %s728 = sadd.s32 %s24, %s23
          %s729 = sadd.s32 %s728, %s22
          %s730 = smul.addr %s729, 128
          %s731 = scalar_lea.hbm %s3, %s730
          %s733 = sshll.u32 %s721, 4
          %s734 = int_to_ptr.vmem [resolvable:$true] %s733
          %736 = dma.vmem_to_hbm [thread:$0]  %s734, 128, %s731, %s718
        $region36: #{tpu_custom_call.1} parent=31 // pred_fallthru
          _
      $region32: #{tpu_custom_call.1} parent=5 // pred_fallthru
        _
      %p737 = scmp.le.s32.totalorder 2, %s12
      // Predicated region
      $region37: #{tpu_custom_call.1} parent=5 // pred_check
        %p738 = pneg %p737
      $region38: #{tpu_custom_call.1} parent=5 // pred_check_branch
        %740 = sbr.rel (%p738) target = $region40
      $region39: #{tpu_custom_call.1} parent=5 // pred_region
        %s741 = ssub.s32 %s12, 2
        // Predicated region
        $region41: #{tpu_custom_call.1} parent=39 // pred_check
          %p742 = pneg %p148
        $region42: #{tpu_custom_call.1} parent=39 // pred_check_branch
          %744 = sbr.rel (%p742) target = $region44
        $region43: #{tpu_custom_call.1} parent=39 // pred_region
          %s745 = sand.u32 %s133, 1
          %s746 = scalar_lea.sflag [#allocation3], %s745
          %s747 = sand.u32 %s133, 1
          %s748 = smul.addr %s747, 8
          %s749 = scalar_lea.vmem [#allocation2], %s748
          %750 = dma.done %s746, 128
        $region44: #{tpu_custom_call.1} parent=39 // pred_fallthru
          _
      $region40: #{tpu_custom_call.1} parent=5 // pred_fallthru
        _
    $region6: #{tpu_custom_call.1} parent=1 // loop_footer
      %s16 = sadd.s32 1, %s12
    $region7: #{tpu_custom_call.1} parent=1 // loop_footer_branch
      %11 = sbr.rel target = $region3
    $region8: #{tpu_custom_call.1} parent=1 // loop_exit
      _
    %751 = vsyncpa [#allocation3], 1
    %s752 = scalar_lea.sflag [#allocation3], 1
    %753 = vsyncpa %s752, 1

</llo_original>
